<compile_context>
chip_gen: v7x
topology: tpu7x:2x2x1
jax: 0.10.0
libtpu: 0.0.40
codegen_flags: <defaults>
</compile_context>

<pallas_src>
import functools

import jax
import jax.numpy as jnp
from jax.experimental import pallas as pl
from jax.experimental.pallas import tpu as pltpu


def _round_up(a: int, b: int) -> int:
    return ((a + b - 1) // b) * b


def binlinear_block_kernel(x_ref, wq_ref, scale_ref, alpha_ref, o_ref, acc_ref):
    k = pl.program_id(2)

    @pl.when(k == 0)
    def _():
        acc_ref[...] = jnp.zeros_like(acc_ref)

    # STEQuantizer forward: sign(x) with sign(0) -> +1.
    # Compare/select in f32 (no bf16 VPU path needed on v5e), then cast the exact
    # +/-1 values to bf16 for the MXU; f32 accumulation keeps this bit-exact.
    xq = jnp.where(x_ref[...] >= 0.0, 1.0, -1.0).astype(jnp.bfloat16)
    acc_ref[...] += jnp.dot(xq, wq_ref[...], preferred_element_type=jnp.float32)

    @pl.when(k == pl.num_programs(2) - 1)
    def _():
        # Epilogue fused under MXU slack: learned rescale + PReLU.
        y = acc_ref[...] * scale_ref[...]          # LearnedRescaleLayer0d
        alpha = alpha_ref[0]                       # binary.PReLU slope (scalar, SMEM)
        o_ref[...] = jnp.where(y >= 0.0, y, alpha * y).astype(o_ref.dtype)


def bin_linear_block_nobn(x, weight_t, scale, alpha, *,
                          tile_m=None, tile_n=None, tile_k=None):
    """x: [M, K] f32, weight_t: [K, N] f32 (transposed torch weight),
    scale: [1, N] f32, alpha: [1] f32 PReLU slope. Returns [M, N] f32."""
    M, K = x.shape
    K2, N = weight_t.shape
    assert K == K2

    # --- Tile selection: tm multiple of 8, tn multiple of 128 (lane-dense),
    #     tk either full-K or a multiple of 128; sizes bounded for v7x VMEM. ---
    if tile_m is None:
        tile_m = min(512, _round_up(M, 8))
    assert tile_m % 8 == 0
    M_pad = _round_up(M, tile_m)

    if tile_n is None:
        n128 = _round_up(N, 128)
        tile_n = next(c for c in (512, 256, 128) if n128 % c == 0)
    assert tile_n % 128 == 0
    N_pad = _round_up(N, tile_n)

    if tile_k is None:
        tile_k = K if K <= 1024 else 512
    K_pad = _round_up(K, tile_k)
    assert tile_k == K_pad or tile_k % 128 == 0

    # --- Wrapper-side weight binarization (hoisted out of the grid loop) and
    #     zero-padding. Zero-padded weight/scale columns and K rows contribute
    #     exactly 0 to the accumulator, so padding never changes real outputs. ---
    wq = jnp.where(weight_t >= 0.0, 1.0, -1.0).astype(jnp.bfloat16)
    wq = jnp.pad(wq, ((0, K_pad - K), (0, N_pad - N)))
    xp = jnp.pad(x.astype(jnp.float32), ((0, M_pad - M), (0, K_pad - K)))
    scale_p = jnp.pad(scale.astype(jnp.float32), ((0, 0), (0, N_pad - N)))
    alpha = alpha.astype(jnp.float32)

    grid = (M_pad // tile_m, N_pad // tile_n, K_pad // tile_k)

    cost = pl.CostEstimate(
        flops=2 * M_pad * N_pad * K_pad,
        transcendentals=0,
        bytes_accessed=xp.size * 4 + wq.size * 2 + M_pad * N_pad * 4,
    )

    out = pl.pallas_call(
        binlinear_block_kernel,
        out_shape=jax.ShapeDtypeStruct((M_pad, N_pad), jnp.float32),
        grid_spec=pltpu.PrefetchScalarGridSpec(
            num_scalar_prefetch=0,
            grid=grid,
            in_specs=[
                pl.BlockSpec((tile_m, tile_k), lambda i, j, k: (i, k)),   # x tile
                pl.BlockSpec((tile_k, tile_n), lambda i, j, k: (k, j)),   # binarized W tile
                pl.BlockSpec((1, tile_n), lambda i, j, k: (0, j)),        # rescale tile
                pl.BlockSpec(memory_space=pltpu.SMEM),                    # alpha scalar
            ],
            out_specs=pl.BlockSpec((tile_m, tile_n), lambda i, j, k: (i, j)),
            scratch_shapes=[pltpu.VMEM((tile_m, tile_n), jnp.float32)],
        ),
        compiler_params=pltpu.CompilerParams(
            dimension_semantics=("parallel", "parallel", "arbitrary"),
            vmem_limit_bytes=48 * 1024 * 1024,
        ),
        cost_estimate=cost,
    )(xp, wq, scale_p, alpha)

    return out[:M, :N]


def reference(x, weight_t, scale, alpha):
    xq = jnp.where(x >= 0.0, 1.0, -1.0)
    wq = jnp.where(weight_t >= 0.0, 1.0, -1.0)
    y = (xq @ wq) * scale
    return jnp.where(y >= 0.0, y, alpha[0] * y)


if __name__ == "__main__":
    key = jax.random.PRNGKey(0)
    k_x, k_w, k_s, k_x2, k_w2, k_s2 = jax.random.split(key, 6)

    # Small shapes consistent with the module (Linear over feature channels).
    batch, in_channels, out_channels = 8, 32, 64
    x = jax.random.normal(k_x, (batch, in_channels), dtype=jnp.float32)
    # torch Linear weight is (out, in); kernel takes the (in, out) transpose.
    weight_t = jax.random.normal(k_w, (in_channels, out_channels), dtype=jnp.float32)
    scale = 1.0 + 0.01 * jax.random.normal(k_s, (1, out_channels), dtype=jnp.float32)
    alpha = jnp.array([0.25], dtype=jnp.float32)   # PReLU default slope

    out = jax.block_until_ready(bin_linear_block_nobn(x, weight_t, scale, alpha))
    ref = reference(x, weight_t, scale, alpha)
    assert out.shape == (batch, out_channels)
    assert jnp.allclose(out, ref, atol=1e-5, rtol=1e-5), "mismatch vs reference (small)"

    # Second check exercising the padded / multi-block (M, N, K) tiled path.
    M2, K2, N2 = 64, 1536, 200   # -> K tiled (3 blocks), N padded to 256, 2 M blocks
    x2 = jax.random.normal(k_x2, (M2, K2), dtype=jnp.float32)
    w2 = jax.random.normal(k_w2, (K2, N2), dtype=jnp.float32)
    s2 = 1.0 + 0.01 * jax.random.normal(k_s2, (1, N2), dtype=jnp.float32)
    out2 = jax.block_until_ready(bin_linear_block_nobn(x2, w2, s2, alpha, tile_m=32))
    ref2 = reference(x2, w2, s2, alpha)
    assert out2.shape == (M2, N2)
    assert jnp.allclose(out2, ref2, atol=1e-5, rtol=1e-5), "mismatch vs reference (tiled)"

    print("KERNEL_OK")
</pallas_src>

<mosaic_0001>
module attributes {stable_mosaic.version = 11 : i64} {
  func.func @binlinear_block_kernel(%arg0: i32, %arg1: i32, %arg2: i32, %arg3: memref<8x32xf32, #tpu.memory_space<vmem>>, %arg4: memref<32x128xbf16, #tpu.memory_space<vmem>>, %arg5: memref<1x128xf32, #tpu.memory_space<vmem>>, %arg6: memref<1xf32, #tpu.memory_space<smem>>, %arg7: memref<8x128xf32, #tpu.memory_space<vmem>>, %arg8: memref<8x128xf32, #tpu.memory_space<vmem>>) attributes {dimension_semantics = [#tpu.dimension_semantics<parallel>, #tpu.dimension_semantics<parallel>, #tpu.dimension_semantics<arbitrary>], iteration_bounds = array<i64: 1, 1, 1>, scalar_prefetch = 0 : i64, scratch_operands = 1 : i64, tpu.core_type = #tpu.core_type<tc>, window_params = [{transform_indices = @transform_0, window_bounds = array<i64: 8, 32>}, {transform_indices = @transform_1, window_bounds = array<i64: 32, 128>}, {transform_indices = @transform_2, window_bounds = array<i64: 1, 128>}, {transform_indices = @transform_3, window_bounds = array<i64: 1>}, {transform_indices = @transform_4, window_bounds = array<i64: 8, 128>}]} {
    %c0_i32 = arith.constant 0 : i32
    %0 = arith.cmpi eq, %arg2, %c0_i32 : i32
    %1 = arith.extui %0 : i1 to i32
    %c0_i32_0 = arith.constant 0 : i32
    %2 = arith.cmpi ne, %1, %c0_i32_0 : i32
    scf.if %2 {
      %cst_13 = arith.constant 0.000000e+00 : f32
      %18 = vector.broadcast %cst_13 : f32 to vector<8x128xf32>
      %c0_14 = arith.constant 0 : index
      %c0_15 = arith.constant 0 : index
      %19 = vector.load %arg8[%c0_14, %c0_15] : memref<8x128xf32, #tpu.memory_space<vmem>>, vector<8x128xf32>
      tpu.vector_store %arg8[%c0_14, %c0_15], %18 {strides = array<i32>} : memref<8x128xf32, #tpu.memory_space<vmem>>, vector<8x128xf32>,
    } else {
    }
    %c0 = arith.constant 0 : index
    %c0_1 = arith.constant 0 : index
    %3 = vector.load %arg3[%c0, %c0_1] : memref<8x32xf32, #tpu.memory_space<vmem>>, vector<8x32xf32>
    %cst = arith.constant 0.000000e+00 : f32
    %4 = vector.broadcast %cst : f32 to vector<8x32xf32>
    %5 = arith.cmpf oge, %3, %4 : vector<8x32xf32>
    %cst_2 = arith.constant 1.000000e+00 : f32
    %cst_3 = arith.constant -1.000000e+00 : f32
    %6 = vector.broadcast %cst_2 : f32 to vector<8x32xf32>
    %7 = vector.broadcast %cst_3 : f32 to vector<8x32xf32>
    %8 = arith.select %5, %6, %7 : vector<8x32xi1>, vector<8x32xf32>
    %9 = arith.truncf %8 : vector<8x32xf32> to vector<8x32xbf16>
    %c0_4 = arith.constant 0 : index
    %c0_5 = arith.constant 0 : index
    %10 = vector.load %arg8[%c0_4, %c0_5] : memref<8x128xf32, #tpu.memory_space<vmem>>, vector<8x128xf32>
    %c0_6 = arith.constant 0 : index
    %c0_7 = arith.constant 0 : index
    %11 = vector.load %arg4[%c0_6, %c0_7] : memref<32x128xbf16, #tpu.memory_space<vmem>>, vector<32x128xbf16>
    %cst_8 = arith.constant dense<0.000000e+00> : vector<8x128xf32>
    %12 = tpu.matmul %9, %11, %cst_8 {dimension_numbers = #tpu.dot_dimension_numbers<[1], [0], [0], [1], [0, 0, 1, 1], [], []>} : vector<8x32xbf16>, vector<32x128xbf16>, vector<8x128xf32> -> vector<8x128xf32>
    %13 = arith.addf %10, %12 : vector<8x128xf32>
    %c0_9 = arith.constant 0 : index
    %c0_10 = arith.constant 0 : index
    %14 = vector.load %arg8[%c0_9, %c0_10] : memref<8x128xf32, #tpu.memory_space<vmem>>, vector<8x128xf32>
    tpu.vector_store %arg8[%c0_9, %c0_10], %13 {strides = array<i32>} : memref<8x128xf32, #tpu.memory_space<vmem>>, vector<8x128xf32>,
    %c0_i32_11 = arith.constant 0 : i32
    %15 = arith.cmpi eq, %arg2, %c0_i32_11 : i32
    %16 = arith.extui %15 : i1 to i32
    %c0_i32_12 = arith.constant 0 : i32
    %17 = arith.cmpi ne, %16, %c0_i32_12 : i32
    scf.if %17 {
      %c0_13 = arith.constant 0 : index
      %c0_14 = arith.constant 0 : index
      %18 = vector.load %arg8[%c0_13, %c0_14] : memref<8x128xf32, #tpu.memory_space<vmem>>, vector<8x128xf32>
      %c0_15 = arith.constant 0 : index
      %c0_16 = arith.constant 0 : index
      %19 = vector.load %arg5[%c0_15, %c0_16] : memref<1x128xf32, #tpu.memory_space<vmem>>, vector<1x128xf32>
      %20 = vector.broadcast %19 : vector<1x128xf32> to vector<8x128xf32>
      %21 = arith.mulf %18, %20 : vector<8x128xf32>
      %c0_17 = arith.constant 0 : index
      %22 = memref.load %arg6[%c0_17] : memref<1xf32, #tpu.memory_space<smem>>
      %cst_18 = arith.constant 0.000000e+00 : f32
      %23 = vector.broadcast %cst_18 : f32 to vector<8x128xf32>
      %24 = arith.cmpf oge, %21, %23 : vector<8x128xf32>
      %25 = vector.broadcast %22 : f32 to vector<8x128xf32>
      %26 = arith.mulf %25, %21 : vector<8x128xf32>
      %27 = arith.select %24, %21, %26 : vector<8x128xi1>, vector<8x128xf32>
      %c0_19 = arith.constant 0 : index
      %c0_20 = arith.constant 0 : index
      %28 = vector.load %arg7[%c0_19, %c0_20] : memref<8x128xf32, #tpu.memory_space<vmem>>, vector<8x128xf32>
      tpu.vector_store %arg7[%c0_19, %c0_20], %27 {strides = array<i32>} : memref<8x128xf32, #tpu.memory_space<vmem>>, vector<8x128xf32>,
    } else {
    }
    return
  }
  func.func @transform_0(%arg0: i32, %arg1: i32, %arg2: i32) -> (i32, i32) {
    %c0_i32 = arith.constant 0 : i32
    return %arg0, %arg2 : i32, i32
  }
  func.func @transform_1(%arg0: i32, %arg1: i32, %arg2: i32) -> (i32, i32) {
    %c0_i32 = arith.constant 0 : i32
    return %arg2, %arg1 : i32, i32
  }
  func.func @transform_2(%arg0: i32, %arg1: i32, %arg2: i32) -> (i32, i32) {
    %c0_i32 = arith.constant 0 : i32
    %c0_i32_0 = arith.constant 0 : i32
    return %c0_i32, %arg1 : i32, i32
  }
  func.func @transform_3(%arg0: i32, %arg1: i32, %arg2: i32) -> i32 {
    %c0_i32 = arith.constant 0 : i32
    %c0_i32_0 = arith.constant 0 : i32
    return %c0_i32 : i32
  }
  func.func @transform_4(%arg0: i32, %arg1: i32, %arg2: i32) -> (i32, i32) {
    %c0_i32 = arith.constant 0 : i32
    return %arg0, %arg1 : i32, i32
  }
}

</mosaic_0001>

<llo_original>
// kernel: tpu_custom_call.1
$region0: #{tpu_custom_call.1}
  #allocation0 [shape = 'u32[]', space=smem, size = 0x4, offset = 0x4, fixed_abs, tag = 'smem constant byte address 0x4 - core index']
  #allocation1 [shape = 'u32[144,128]{1,0:T(1,128)}', space=vmem, size = 0x12000, scoped, tag = 'internal scratch']
  #allocation2 [shape = 'f32[8,128]{1,0:T(8,128)}', space=vmem, size = 0x1000, scoped, tag = 'scratch operand']
  #allocation3 [shape = 'f32[1]{0:T(128)S(6)}', space=smem, size = 0x200, scoped, tag = 'scoped memory for tpu_custom_call.1']
  %s0 = inlined_call_operand.hbm [shape: f32[8,32], index: 0, kind: input, shape index: {}]
  %s1 = inlined_call_operand.hbm [shape: bf16[32,128], index: 1, kind: input, shape index: {}]
  %s2 = inlined_call_operand.vmem [shape: f32[1,128], index: 2, kind: input, shape index: {}]
  %s3 = inlined_call_operand.<no memory space> [shape: f32[1], index: 3, kind: input, shape index: {}]
  %s4 = inlined_call_operand.hbm [shape: f32[8,128], index: 4, kind: output, shape index: {}]
  %s5 = sld [smem:[#allocation0]]
  $region42: #{tpu_custom_call.1} parent=0
    _
  %s7 = ssub.s32 1, %s5
  %s8 = scalar_select 0, %s7, %s5
  %9 = sst [smem:[#allocation3]] %s3
  $region1: #{tpu_custom_call.1} parent=0
    #allocation4 [shape = 'u8[4096]{0}', space=vmem, size = 0x1000, scoped, tag = 'input window, operand 0, single buffered']
    #allocation5 [shape = 's32[1]{0}', space=sflag, size = 0x4, scoped, tag = 'scoped memory for tpu_custom_call.1']
    #allocation6 [shape = 's32[1]{0}', space=sflag, size = 0x4, scoped, tag = 'scoped memory for tpu_custom_call.1']
    #allocation7 [shape = 'u8[8192]{0}', space=vmem, size = 0x2000, scoped, tag = 'input window, operand 1, single buffered']
    #allocation8 [shape = 's32[1]{0}', space=sflag, size = 0x4, scoped, tag = 'scoped memory for tpu_custom_call.1']
    #allocation9 [shape = 'u8[4096]{0}', space=vmem, size = 0x1000, scoped, tag = 'output window, operand 0, single buffered']
    %10 = vsyncpa [#allocation5], 0
    %11 = vsyncpa [#allocation8], 0
    %12 = vsyncpa [#allocation6], 0
    // Predicated region
    $region2: #{tpu_custom_call.1} parent=1 // pred_check
      _
    $region3: #{tpu_custom_call.1} parent=1 // pred_check_branch
      %14 = sbr.rel (0) target = $region5
    $region4: #{tpu_custom_call.1} parent=1 // pred_region
      %s16 = ssub.s32 128, 128
      %17 = vsyncadd [#allocation5], %s16
      %s19 = sshll.u32 [#allocation4], 4
      %s20 = int_to_ptr.vmem [resolvable:$true] %s19
      %22 = dma.hbm_to_vmem [thread:$0]  %s0, 128, %s20, [#allocation5]
    $region5: #{tpu_custom_call.1} parent=1 // pred_fallthru
      _
    // Predicated region
    $region6: #{tpu_custom_call.1} parent=1 // pred_check
      _
    $region7: #{tpu_custom_call.1} parent=1 // pred_check_branch
      %24 = sbr.rel (0) target = $region9
    $region8: #{tpu_custom_call.1} parent=1 // pred_region
      %s26 = ssub.s32 256, 256
      %27 = vsyncadd [#allocation8], %s26
      %s28 = sshll.u32 [#allocation7], 4
      %s29 = int_to_ptr.vmem [resolvable:$true] %s28
      %34 = dma.hbm_to_vmem [thread:$0]  %s1, 256, %s29, [#allocation8], 64, 64, 4
    $region9: #{tpu_custom_call.1} parent=1 // pred_fallthru
      _
    // Predicated region
    $region10: #{tpu_custom_call.1} parent=1 // pred_check
      _
    $region11: #{tpu_custom_call.1} parent=1 // pred_check_branch
      %36 = sbr.rel (0) target = $region13
    $region12: #{tpu_custom_call.1} parent=1 // pred_region
      _
    $region13: #{tpu_custom_call.1} parent=1 // pred_fallthru
      _
    // Predicated region
    $region14: #{tpu_custom_call.1} parent=1 // pred_check
      _
    $region15: #{tpu_custom_call.1} parent=1 // pred_check_branch
      %38 = sbr.rel (0) target = $region17
    $region16: #{tpu_custom_call.1} parent=1 // pred_region
      _
    $region17: #{tpu_custom_call.1} parent=1 // pred_fallthru
      _
    // Predicated region
    $region18: #{tpu_custom_call.1} parent=1 // pred_check
      _
    $region19: #{tpu_custom_call.1} parent=1 // pred_check_branch
      %40 = sbr.rel (0) target = $region21
    $region20: #{tpu_custom_call.1} parent=1 // pred_region
      %41 = dma.done [#allocation5], 128
    $region21: #{tpu_custom_call.1} parent=1 // pred_fallthru
      _
    // Predicated region
    $region22: #{tpu_custom_call.1} parent=1 // pred_check
      _
    $region23: #{tpu_custom_call.1} parent=1 // pred_check_branch
      %43 = sbr.rel (0) target = $region25
    $region24: #{tpu_custom_call.1} parent=1 // pred_region
      %44 = dma.done [#allocation8], 256
    $region25: #{tpu_custom_call.1} parent=1 // pred_fallthru
      _
    %p46 = scmp.eq.s32.totalorder 0, 0
    // Predicated region
    $region26: #{tpu_custom_call.1} parent=1 // pred_check
      %p47 = pneg %p46
    $region27: #{tpu_custom_call.1} parent=1 // pred_check_branch
      %49 = sbr.rel (%p47) target = $region29
    $region28: #{tpu_custom_call.1} parent=1 // pred_region
      %50 = vst [vmem:[#allocation2] sm:$0xff] 0.0
    $region29: #{tpu_custom_call.1} parent=1 // pred_fallthru
      _
    %v51 = vld [vmem:[#allocation4] sm:$0xff]
    %vm52 = vcmp.ge.f32.partialorder %v51, 0.0
    %v53 = vsel %vm52, 1.0, -1.0
    %v54 = vpack.c.bf16 %v53, %v53
    %v55 = vld [vmem:[#allocation2] sm:$0xff]
    %v56 = vld [vmem:[#allocation7] sm:$0xf]
    %v57 = vld [vmem:[#allocation7 + $0x4] sm:$0xf]
    %v58 = vld [vmem:[#allocation7 + $0x8] sm:$0xf]
    %v59 = vld [vmem:[#allocation7 + $0xc] sm:$0xf]
    %v64 = vunpack.c.l.b16 %v56
    %v65 = vunpack.c.l.b16 %v57
    %v66 = vunpack.c.l.b16 %v58
    %v67 = vunpack.c.l.b16 %v59
    %v68 = vpack.c.b16 %v65, %v64
    %v69 = vpack.c.b16 %v67, %v66
    %vm72 = vcmask 261120
    %v74 = vsel %vm72, %v54, 0
    %76 = vmatprep.subr.bf16.mxu0 0
    %77 = vmatpush1.bf16.msra.mxu0 %v68
    %78 = vmatprep.subr.bf16.mxu0 0
    %79 = vmatpush1.bf16.msra.mxu0 %v69
    %80 = vmatprep.subr.bf16.mxu0 0
    %81 = vmatpush1.bf16.msra.mxu0 0
    %82 = vmatprep.subr.bf16.mxu0 0
    %83 = vmatpush1.bf16.msra.mxu0 0
    %84 = vmatprep.subr.bf16.mxu0 0
    %85 = vmatpush1.bf16.msra.mxu0 0
    %86 = vmatprep.subr.bf16.mxu0 0
    %87 = vmatpush1.bf16.msra.mxu0 0
    %88 = vmatprep.subr.bf16.mxu0 0
    %89 = vmatpush1.bf16.msra.mxu0 0
    %90 = vmatprep.subr.bf16.mxu0 0
    %91 = vmatpush1.bf16.msra.mxu0 0
    %92 = vmatprep.subr.bf16.mxu0 0
    %93 = vmatpush1.bf16.msra.mxu0 0
    %94 = vmatprep.subr.bf16.mxu0 0
    %95 = vmatpush1.bf16.msra.mxu0 0
    %96 = vmatprep.subr.bf16.mxu0 0
    %97 = vmatpush1.bf16.msra.mxu0 0
    %98 = vmatprep.subr.bf16.mxu0 0
    %99 = vmatpush1.bf16.msra.mxu0 0
    %100 = vmatprep.subr.bf16.mxu0 0
    %101 = vmatpush1.bf16.msra.mxu0 0
    %102 = vmatprep.subr.bf16.mxu0 0
    %103 = vmatpush1.bf16.msra.mxu0 0
    %104 = vmatprep.subr.bf16.mxu0 0
    %105 = vmatpush1.bf16.msra.mxu0 0
    %106 = vmatprep.subr.bf16.mxu0 0
    %107 = vmatpush1.bf16.msra.mxu0 0
    %108 = vmatprep.mubr.bf16.mxu0 0
    %109 = vmatmul.mubr.bf16.gmra.mrb[0].mxu0 %v74
    %v110 = vpop.f32.mrb[0].mxu0
    %v111 = vadd.f32 0.0, %v110
    %v112 = vpop.f32.mrb[0].mxu0
    %v113 = vpop.f32.mrb[0].mxu0
    %v114 = vpop.f32.mrb[0].mxu0
    %115 = vdwg.mxu0
    %v116 = vadd.f32 %v55, %v111
    %117 = vst [vmem:[#allocation2] sm:$0xff] %v116
    // Predicated region
    $region30: #{tpu_custom_call.1} parent=1 // pred_check
      %p118 = pneg %p46
    $region31: #{tpu_custom_call.1} parent=1 // pred_check_branch
      %120 = sbr.rel (%p118) target = $region33
    $region32: #{tpu_custom_call.1} parent=1 // pred_region
      %v121 = vld [vmem:[#allocation2] sm:$0xff]
      %v122 = vld [vmem:[%s2] sm:$0x1]
      %v124 = vlaneseq
      %v125 = vshrl.u32 %v124, 7
      %v126 = vsub.s32 0, %v125
      %v127 = vrot.slane %v122, %v126
      %v129 = vmul.f32 %v121, %v127
      %s130 = sld [smem:[#allocation3]]
      %vm131 = vcmp.ge.f32.partialorder %v129, 0.0
      %v132 = vstv %s130
      %v133 = vmul.f32 %v132, %v129
      %v134 = vsel %vm131, %v129, %v133
      %135 = vst [vmem:[#allocation9] sm:$0xff] %v134
    $region33: #{tpu_custom_call.1} parent=1 // pred_fallthru
      _
    // Predicated region
    $region34: #{tpu_custom_call.1} parent=1 // pred_check
      _
    $region35: #{tpu_custom_call.1} parent=1 // pred_check_branch
      %137 = sbr.rel (0) target = $region37
    $region36: #{tpu_custom_call.1} parent=1 // pred_region
      %s139 = ssub.s32 128, 128
      %140 = vsyncadd [#allocation6], %s139
      %s142 = sshll.u32 [#allocation9], 4
      %s143 = int_to_ptr.vmem [resolvable:$true] %s142
      %145 = dma.vmem_to_hbm [thread:$0]  %s143, 128, %s4, [#allocation6]
    $region37: #{tpu_custom_call.1} parent=1 // pred_fallthru
      _
    // Predicated region
    $region38: #{tpu_custom_call.1} parent=1 // pred_check
      _
    $region39: #{tpu_custom_call.1} parent=1 // pred_check_branch
      %147 = sbr.rel (0) target = $region41
    $region40: #{tpu_custom_call.1} parent=1 // pred_region
      %148 = dma.done [#allocation6], 128
    $region41: #{tpu_custom_call.1} parent=1 // pred_fallthru
      _
    %149 = vsyncpa [#allocation5], 1
    %150 = vsyncpa [#allocation8], 1
    %151 = vsyncpa [#allocation6], 1

</llo_original>
